<compile_context>
chip_gen: v7x
topology: tpu7x:2x2x1
jax: 0.10.0
libtpu: 0.0.40
codegen_flags: <defaults>
</compile_context>

<pallas_src>
import functools

import jax
import jax.numpy as jnp
from jax.experimental import pallas as pl
from jax.experimental.pallas import tpu as pltpu

NUM_HEADS = 8  # CrossAttention default


def _round_up(x, m):
    return (x + m - 1) // m * m


def _pick_tile(B, rows_per_batch, target_rows=256, max_tile=256):
    """Batch tile: multiple of 8, aims for >= target_rows MXU rows, and divides the
    8-rounded batch so no padded activation copy is needed."""
    Bp8 = _round_up(max(B, 1), 8)
    want = max(8, _round_up(-(-target_rows // max(rows_per_batch, 1)), 8))
    tb = min(max_tile, Bp8, want)
    while Bp8 % tb:
        tb -= 8
    return max(tb, 8)


# --------------------------------------------------------------------------
# Parameter preparation (done once at model-load time, NOT per forward call)
# --------------------------------------------------------------------------
def prepare_cross_attn_params(raw):
    """Derive the fused/packed weights from the raw CrossAttention parameters."""
    wk, wv, wp = raw["wk"], raw["wv"], raw["wp"]
    bk, bv, bp = raw["bk"], raw["bv"], raw["bp"]
    wv32 = wv.astype(jnp.float32)
    wp32 = wp.astype(jnp.float32)
    p = dict(raw)
    # Fused M == 1 path: softmax over one key is identically 1, so
    #   CrossAttention(x, ctx) == proj(v(ctx)) == ctx @ (Wv @ Wp) + (bv @ Wp + bp).
    # Product computed in f32 (then cast bf16) to avoid compounding bf16 error.
    p["w_m1"] = (wv32 @ wp32).astype(jnp.bfloat16)
    p["b_m1"] = (bv.astype(jnp.float32) @ wp32 + bp).astype(jnp.float32)
    # Packed K|V projection for the general (M > 1) path: one DMA stream, one matmul.
    p["wkv"] = jnp.concatenate([wk, wv], axis=1)          # (C, 2C) bf16
    p["bkv"] = jnp.concatenate([bk, bv], axis=1)          # (1, 2C) f32
    return p


# --------------------------------------------------------------------------
# Fast path: M == 1 context token (the shape MetaAdapter always produces).
# --------------------------------------------------------------------------
def _cross_attn_m1_kernel(ctx_ref, w_ref, b_ref, o_ref):
    ctx = ctx_ref[...].astype(jnp.bfloat16)                               # (TB, C)
    out = jnp.dot(ctx, w_ref[...], preferred_element_type=jnp.float32) + b_ref[...]
    o_ref[...] = out.astype(o_ref.dtype)


def cross_attention_m1_pallas(ctx, p, batch_tile=None):
    """ctx: (B, C) = the single context token per batch element. Returns (B, C)."""
    B, C = ctx.shape
    tb = batch_tile if batch_tile is not None else _pick_tile(B, 1)
    tb = min(tb, _round_up(B, 8))
    Bp = _round_up(B, tb)
    if Bp != B:
        ctx = jnp.pad(ctx, ((0, Bp - B), (0, 0)))

    # Constant-index weight/bias blocks -> single buffer (no pipelining needed).
    wspec = pl.BlockSpec((C, C), lambda i: (0, 0), pipeline_mode=pl.Buffered(1))
    bspec = pl.BlockSpec((1, C), lambda i: (0, 0), pipeline_mode=pl.Buffered(1))
    rspec = pl.BlockSpec((tb, C), lambda i: (i, 0))

    out = pl.pallas_call(
        _cross_attn_m1_kernel,
        out_shape=jax.ShapeDtypeStruct((Bp, C), ctx.dtype),
        grid=(Bp // tb,),
        in_specs=[rspec, wspec, bspec],
        out_specs=rspec,
        compiler_params=pltpu.CompilerParams(dimension_semantics=("parallel",)),
    )(ctx, p["w_m1"], p["b_m1"])
    return out[:B]


# --------------------------------------------------------------------------
# General cross attention (M > 1), batch-blocked.
# --------------------------------------------------------------------------
def _cross_attn_kernel(x_ref, ctx_ref, wq_ref, bq_ref, wkv_ref, bkv_ref,
                       wp_ref, bp_ref, o_ref, *, num_heads, scale):
    TB, N, C = x_ref.shape
    _, M, _ = ctx_ref.shape
    dh = C // num_heads

    # Fold the batch tile into matmul rows: (TB*N, C) and (TB*M, C) MXU matmuls, bf16 x bf16.
    x2 = x_ref[...].reshape(TB * N, C).astype(jnp.bfloat16)
    c2 = ctx_ref[...].reshape(TB * M, C).astype(jnp.bfloat16)

    q = jnp.dot(x2, wq_ref[...], preferred_element_type=jnp.float32) + bq_ref[...]
    kv = jnp.dot(c2, wkv_ref[...], preferred_element_type=jnp.float32) + bkv_ref[...]

    # Pre-scale q once, cast QKV to bf16 for the MXU (f32 accumulation below).
    q3 = (q * scale).reshape(TB, N, C).astype(jnp.bfloat16)
    k3 = kv[:, :C].reshape(TB, M, C).astype(jnp.bfloat16)    # lane-aligned split (C % 128 == 0)
    v3 = kv[:, C:].reshape(TB, M, C).astype(jnp.bfloat16)

    # Static per-head unroll over lane slices (robust lowering; see header note).
    outs = []
    for h in range(num_heads):
        qh = q3[:, :, h * dh:(h + 1) * dh]                    # (TB, N, dh)
        kh = k3[:, :, h * dh:(h + 1) * dh]                    # (TB, M, dh)
        vh = v3[:, :, h * dh:(h + 1) * dh]                    # (TB, M, dh)

        s = jnp.einsum("bnd,bmd->bnm", qh, kh, preferred_element_type=jnp.float32)
        m = jnp.max(s, axis=-1, keepdims=True)
        e = jnp.exp(s - m)
        prob = e * pl.reciprocal(jnp.sum(e, axis=-1, keepdims=True), approx=True)
        outs.append(jnp.einsum("bnm,bmd->bnd", prob.astype(jnp.bfloat16), vh,
                               preferred_element_type=jnp.float32))

    o = jnp.concatenate(outs, axis=-1).reshape(TB * N, C)
    out = jnp.dot(o.astype(jnp.bfloat16), wp_ref[...],
                  preferred_element_type=jnp.float32) + bp_ref[...]
    o_ref[...] = out.reshape(TB, N, C).astype(o_ref.dtype)


def cross_attention_pallas(x, ctx, p, num_heads=NUM_HEADS, batch_tile=None):
    """x: (B, N, C) queries; ctx: (B, M, C) context. Matches CrossAttention.forward."""
    B, N, C = x.shape
    _, M, _ = ctx.shape
    assert C % num_heads == 0, "embed_dim must be divisible by num_heads"

    if M == 1:
        # Deployed path: softmax over one key is identically 1 -> single fused matmul;
        # wq/wk/bq/bk and the separate wv/wp never leave HBM.
        out = cross_attention_m1_pallas(ctx[:, 0, :], p, batch_tile=batch_tile)
        return jnp.broadcast_to(out[:, None, :], (B, N, C)).astype(x.dtype)

    assert C % 128 == 0, "embed_dim must be lane-aligned (multiple of 128) for this kernel"
    scale = float((C // num_heads) ** (-0.5))
    tb = batch_tile if batch_tile is not None else _pick_tile(B, N)
    tb = min(tb, _round_up(B, 8))
    Bp = _round_up(B, tb)
    if Bp != B:
        x = jnp.pad(x, ((0, Bp - B), (0, 0), (0, 0)))
        ctx = jnp.pad(ctx, ((0, Bp - B), (0, 0), (0, 0)))

    kernel = functools.partial(_cross_attn_kernel, num_heads=num_heads, scale=scale)

    def const(shape):  # constant-index weight/bias block -> single buffer
        return pl.BlockSpec(shape, lambda i: (0, 0), pipeline_mode=pl.Buffered(1))

    out = pl.pallas_call(
        kernel,
        out_shape=jax.ShapeDtypeStruct((Bp, N, C), x.dtype),
        grid=(Bp // tb,),
        in_specs=[
            pl.BlockSpec((tb, N, C), lambda i: (i, 0, 0)),   # x
            pl.BlockSpec((tb, M, C), lambda i: (i, 0, 0)),   # ctx
            const((C, C)), const((1, C)),                    # wq, bq
            const((C, 2 * C)), const((1, 2 * C)),            # wk|wv, bk|bv (precomputed)
            const((C, C)), const((1, C)),                    # wp, bp
        ],
        out_specs=pl.BlockSpec((tb, N, C), lambda i: (i, 0, 0)),
        compiler_params=pltpu.CompilerParams(dimension_semantics=("parallel",)),
    )(x, ctx, p["wq"], p["bq"], p["wkv"], p["bkv"], p["wp"], p["bp"])
    return out[:B]


# --------------------------------------------------------------------------
# Metadata -> "text features" (stand-in for MetaTextGenerator)
# --------------------------------------------------------------------------
def synth_text_features(metadata, tables):
    # TODO(synk): CLIP's BPE SimpleTokenizer + CLIP text transformer (encode_text) have no
    # clean Pallas equivalent; deterministic per-category embedding lookups (same
    # categorical bucketing as MetaTextGenerator) stand in.
    temp = metadata["temperature"].astype(jnp.float32)
    humid = metadata["humidity"].astype(jnp.float32)
    rain = metadata["rain"].astype(jnp.float32)
    angle = metadata["angle"].astype(jnp.int32)

    temp_cat = jnp.where(temp < 15.0, 0, jnp.where(temp < 25.0, 1, 2))
    humid_cat = jnp.where(humid < 60.0, 0, jnp.where(humid < 80.0, 1, 2))
    rain_cat = jnp.where(rain == 0.0, 0,
                         jnp.where(rain < 10.0, 1, jnp.where(rain < 50.0, 2, 3)))
    angle_cat = jnp.where((angle >= 0) & (angle <= 3), angle, 0)

    return (tables["temp"][temp_cat] + tables["humid"][humid_cat]
            + tables["rain"][rain_cat] + tables["angle"][angle_cat])   # (B, C)


# --------------------------------------------------------------------------
# MetaAdapter forward
# --------------------------------------------------------------------------
def meta_adapter_forward(image_features, metadata, params, batch_tile=None):
    text_features = synth_text_features(metadata, params["text_tables"])   # (B, C)
    if image_features.ndim == 2:
        image_features = image_features[:, None, :]   # (B, 1, C)
    text_features = text_features[:, None, :]          # (B, 1, C) -> M == 1 always
    enhanced = cross_attention_pallas(image_features, text_features,
                                      params["cross_attn"], batch_tile=batch_tile)
    if enhanced.shape[1] == 1:                          # torch's .squeeze(1)
        enhanced = enhanced[:, 0, :]
    return enhanced


# --------------------------------------------------------------------------
# Pure-JAX f32 reference (weights up-cast from their bf16 storage)
# --------------------------------------------------------------------------
def cross_attention_ref(x, ctx, p, num_heads=NUM_HEADS):
    B, N, C = x.shape
    M = ctx.shape[1]
    dh = C // num_heads
    scale = dh ** (-0.5)
    wq, wk, wv, wp = (p[k].astype(jnp.float32) for k in ("wq", "wk", "wv", "wp"))
    q = x @ wq + p["bq"][0]
    k = ctx @ wk + p["bk"][0]
    v = ctx @ wv + p["bv"][0]
    q = q.reshape(B, N, num_heads, dh).transpose(0, 2, 1, 3)
    k = k.reshape(B, M, num_heads, dh).transpose(0, 2, 1, 3)
    v = v.reshape(B, M, num_heads, dh).transpose(0, 2, 1, 3)
    attn = jax.nn.softmax(jnp.einsum("bhnd,bhmd->bhnm", q, k) * scale, axis=-1)
    o = jnp.einsum("bhnm,bhmd->bhnd", attn, v).transpose(0, 2, 1, 3).reshape(B, N, C)
    return o @ wp + p["bp"][0]


# --------------------------------------------------------------------------
# Deterministic parameter init
# --------------------------------------------------------------------------
def init_params(key, embed_dim):
    # Weights are pre-transposed to (in, out) (torch Linear .weight.T) and stored bf16
    # (the kernel is HBM-bound on the weight reads). Biases stay f32.
    # TODO(synk): on v7x only, fp8 weight storage (+ per-tensor scale) would halve weight
    # bytes again; kept bf16 here for cross-generation portability.
    ks = jax.random.split(key, 12)
    s = 0.02

    def w(k):
        return (s * jax.random.normal(k, (embed_dim, embed_dim))).astype(jnp.bfloat16)

    def b(k):
        return (s * jax.random.normal(k, (1, embed_dim))).astype(jnp.float32)

    cross = {"wq": w(ks[0]), "bq": b(ks[1]),
             "wk": w(ks[2]), "bk": b(ks[3]),
             "wv": w(ks[4]), "bv": b(ks[5]),
             "wp": w(ks[6]), "bp": b(ks[7])}
    tables = {
        "temp": jax.random.normal(ks[8], (3, embed_dim), dtype=jnp.float32),
        "humid": jax.random.normal(ks[9], (3, embed_dim), dtype=jnp.float32),
        "rain": jax.random.normal(ks[10], (4, embed_dim), dtype=jnp.float32),
        "angle": jax.random.normal(ks[11], (4, embed_dim), dtype=jnp.float32),
    }
    return {"cross_attn": prepare_cross_attn_params(cross), "text_tables": tables}


if __name__ == "__main__":
    B = 16
    EMBED_DIM = 128   # small lane-aligned stand-in for embed_dim=768 (divisible by NUM_HEADS)

    key = jax.random.PRNGKey(0)
    kp, kx, kg1, kg2 = jax.random.split(key, 4)
    params = init_params(kp, EMBED_DIM)

    image_features = jax.random.normal(kx, (B, EMBED_DIM), jnp.float32)
    metadata = {
        "temperature": jnp.linspace(5.0, 35.0, B).astype(jnp.float32),
        "humidity": jnp.linspace(40.0, 95.0, B).astype(jnp.float32),
        "rain": jnp.where(jnp.arange(B) % 2 == 0, 0.0,
                          jnp.linspace(1.0, 80.0, B)).astype(jnp.float32),
        "angle": (jnp.arange(B) % 4).astype(jnp.int32),
    }

    # --- MetaAdapter forward: deployed M == 1 path (single fused-weight matmul kernel) ---
    out = meta_adapter_forward(image_features, metadata, params)
    out = jax.block_until_ready(out)

    text_features = synth_text_features(metadata, params["text_tables"])
    ref = cross_attention_ref(image_features[:, None, :], text_features[:, None, :],
                              params["cross_attn"])[:, 0, :]
    assert out.shape == (B, EMBED_DIM)
    # tolerance covers bf16 fused weight / activations in the kernel vs the f32 reference
    assert jnp.allclose(out, ref, atol=5e-3, rtol=2e-2), "M==1 path mismatch vs reference"

    # --- General (M > 1) cross-attention kernel at small N, M ---
    N, M = 8, 8
    xg = jax.random.normal(kg1, (B, N, EMBED_DIM), jnp.float32)
    cg = jax.random.normal(kg2, (B, M, EMBED_DIM), jnp.float32)
    out_g = jax.block_until_ready(
        cross_attention_pallas(xg, cg, params["cross_attn"]))
    ref_g = cross_attention_ref(xg, cg, params["cross_attn"])
    assert out_g.shape == (B, N, EMBED_DIM)
    assert jnp.allclose(out_g, ref_g, atol=5e-3, rtol=2e-2), "general path mismatch vs reference"

    print("KERNEL_OK")
</pallas_src>

<mosaic_0001>
module attributes {stable_mosaic.version = 11 : i64} {
  func.func @_cross_attn_m1_kernel(%arg0: i32, %arg1: memref<16x128xf32, #tpu.memory_space<vmem>>, %arg2: memref<128x128xbf16, #tpu.memory_space<vmem>>, %arg3: memref<1x128xf32, #tpu.memory_space<vmem>>, %arg4: memref<16x128xf32, #tpu.memory_space<vmem>>) attributes {dimension_semantics = [#tpu.dimension_semantics<parallel>], iteration_bounds = array<i64: 1>, scalar_prefetch = 0 : i64, scratch_operands = 0 : i64, tpu.core_type = #tpu.core_type<tc>, window_params = [{transform_indices = @transform_0, window_bounds = array<i64: 16, 128>}, {pipeline_mode = #tpu.pipeline_mode<synchronous>, transform_indices = @transform_1, window_bounds = array<i64: 128, 128>}, {pipeline_mode = #tpu.pipeline_mode<synchronous>, transform_indices = @transform_2, window_bounds = array<i64: 1, 128>}, {transform_indices = @transform_3, window_bounds = array<i64: 16, 128>}]} {
    %c0 = arith.constant 0 : index
    %c0_0 = arith.constant 0 : index
    %0 = vector.load %arg1[%c0, %c0_0] : memref<16x128xf32, #tpu.memory_space<vmem>>, vector<16x128xf32>
    %1 = arith.truncf %0 : vector<16x128xf32> to vector<16x128xbf16>
    %c0_1 = arith.constant 0 : index
    %c0_2 = arith.constant 0 : index
    %2 = vector.load %arg2[%c0_1, %c0_2] : memref<128x128xbf16, #tpu.memory_space<vmem>>, vector<128x128xbf16>
    %cst = arith.constant dense<0.000000e+00> : vector<16x128xf32>
    %3 = tpu.matmul %1, %2, %cst {dimension_numbers = #tpu.dot_dimension_numbers<[1], [0], [0], [1], [0, 0, 1, 1], [], []>} : vector<16x128xbf16>, vector<128x128xbf16>, vector<16x128xf32> -> vector<16x128xf32>
    %c0_3 = arith.constant 0 : index
    %c0_4 = arith.constant 0 : index
    %4 = vector.load %arg3[%c0_3, %c0_4] : memref<1x128xf32, #tpu.memory_space<vmem>>, vector<1x128xf32>
    %5 = vector.broadcast %4 : vector<1x128xf32> to vector<16x128xf32>
    %6 = arith.addf %3, %5 : vector<16x128xf32>
    %c0_5 = arith.constant 0 : index
    %c0_6 = arith.constant 0 : index
    %7 = vector.load %arg4[%c0_5, %c0_6] : memref<16x128xf32, #tpu.memory_space<vmem>>, vector<16x128xf32>
    tpu.vector_store %arg4[%c0_5, %c0_6], %6 {strides = array<i32>} : memref<16x128xf32, #tpu.memory_space<vmem>>, vector<16x128xf32>,
    return
  }
  func.func @transform_0(%arg0: i32) -> (i32, i32) {
    %c0_i32 = arith.constant 0 : i32
    %c0_i32_0 = arith.constant 0 : i32
    return %arg0, %c0_i32 : i32, i32
  }
  func.func @transform_1(%arg0: i32) -> (i32, i32) {
    %c0_i32 = arith.constant 0 : i32
    %c0_i32_0 = arith.constant 0 : i32
    %c0_i32_1 = arith.constant 0 : i32
    return %c0_i32, %c0_i32_0 : i32, i32
  }
  func.func @transform_2(%arg0: i32) -> (i32, i32) {
    %c0_i32 = arith.constant 0 : i32
    %c0_i32_0 = arith.constant 0 : i32
    %c0_i32_1 = arith.constant 0 : i32
    return %c0_i32, %c0_i32_0 : i32, i32
  }
  func.func @transform_3(%arg0: i32) -> (i32, i32) {
    %c0_i32 = arith.constant 0 : i32
    %c0_i32_0 = arith.constant 0 : i32
    return %arg0, %c0_i32 : i32, i32
  }
}

</mosaic_0001>

<llo_original>
// kernel: tpu_custom_call.1
$region0: #{tpu_custom_call.1}
  #allocation0 [shape = 'u32[]', space=smem, size = 0x4, offset = 0x4, fixed_abs, tag = 'smem constant byte address 0x4 - core index']
  #allocation1 [shape = 'u32[144,128]{1,0:T(1,128)}', space=vmem, size = 0x12000, scoped, tag = 'internal scratch']
  %s0 = inlined_call_operand.hbm [shape: f32[16,128], index: 0, kind: input, shape index: {}]
  %s1 = inlined_call_operand.hbm [shape: bf16[128,128], index: 1, kind: input, shape index: {}]
  %s2 = inlined_call_operand.vmem [shape: f32[1,128], index: 2, kind: input, shape index: {}]
  %s3 = inlined_call_operand.hbm [shape: f32[16,128], index: 3, kind: output, shape index: {}]
  %s4 = sld [smem:[#allocation0]]
  $region30: #{tpu_custom_call.1} parent=0
    _
  %s6 = ssub.s32 1, %s4
  %s7 = scalar_select 0, %s6, %s4
  $region1: #{tpu_custom_call.1} parent=0
    #allocation2 [shape = 'u8[8192]{0}', space=vmem, size = 0x2000, scoped, tag = 'input window, operand 0, single buffered']
    #allocation3 [shape = 's32[1]{0}', space=sflag, size = 0x4, scoped, tag = 'scoped memory for tpu_custom_call.1']
    #allocation4 [shape = 's32[1]{0}', space=sflag, size = 0x4, scoped, tag = 'scoped memory for tpu_custom_call.1']
    #allocation5 [shape = 'u8[32768]{0}', space=vmem, size = 0x8000, scoped, tag = 'input window, operand 1, single buffered']
    #allocation6 [shape = 's32[1]{0}', space=sflag, size = 0x4, scoped, tag = 'scoped memory for tpu_custom_call.1']
    #allocation7 [shape = 'u8[8192]{0}', space=vmem, size = 0x2000, scoped, tag = 'output window, operand 0, single buffered']
    %8 = vsyncpa [#allocation3], 0
    %9 = vsyncpa [#allocation6], 0
    %10 = vsyncpa [#allocation4], 0
    // Predicated region
    $region2: #{tpu_custom_call.1} parent=1 // pred_check
      _
    $region3: #{tpu_custom_call.1} parent=1 // pred_check_branch
      %12 = sbr.rel (0) target = $region5
    $region4: #{tpu_custom_call.1} parent=1 // pred_region
      %s14 = ssub.s32 256, 256
      %15 = vsyncadd [#allocation3], %s14
      %s16 = sshll.u32 [#allocation2], 4
      %s17 = int_to_ptr.vmem [resolvable:$true] %s16
      %22 = dma.hbm_to_vmem [thread:$0]  %s0, 256, %s17, [#allocation3], 128, 128, 8
    $region5: #{tpu_custom_call.1} parent=1 // pred_fallthru
      _
    // Predicated region
    $region6: #{tpu_custom_call.1} parent=1 // pred_check
      _
    $region7: #{tpu_custom_call.1} parent=1 // pred_check_branch
      %24 = sbr.rel (0) target = $region9
    $region8: #{tpu_custom_call.1} parent=1 // pred_region
      %s26 = ssub.s32 1024, 1024
      %27 = vsyncadd [#allocation6], %s26
      %s28 = sshll.u32 [#allocation5], 4
      %s29 = int_to_ptr.vmem [resolvable:$true] %s28
      %34 = dma.hbm_to_vmem [thread:$0]  %s1, 1024, %s29, [#allocation6], 64, 64, 4
    $region9: #{tpu_custom_call.1} parent=1 // pred_fallthru
      _
    // Predicated region
    $region10: #{tpu_custom_call.1} parent=1 // pred_check
      _
    $region11: #{tpu_custom_call.1} parent=1 // pred_check_branch
      %36 = sbr.rel (0) target = $region13
    $region12: #{tpu_custom_call.1} parent=1 // pred_region
      _
    $region13: #{tpu_custom_call.1} parent=1 // pred_fallthru
      _
    // Predicated region
    $region14: #{tpu_custom_call.1} parent=1 // pred_check
      _
    $region15: #{tpu_custom_call.1} parent=1 // pred_check_branch
      %38 = sbr.rel (0) target = $region17
    $region16: #{tpu_custom_call.1} parent=1 // pred_region
      %39 = dma.done [#allocation3], 256
    $region17: #{tpu_custom_call.1} parent=1 // pred_fallthru
      _
    // Predicated region
    $region18: #{tpu_custom_call.1} parent=1 // pred_check
      _
    $region19: #{tpu_custom_call.1} parent=1 // pred_check_branch
      %41 = sbr.rel (0) target = $region21
    $region20: #{tpu_custom_call.1} parent=1 // pred_region
      %42 = dma.done [#allocation6], 1024
    $region21: #{tpu_custom_call.1} parent=1 // pred_fallthru
      _
    %v44 = vld [vmem:[#allocation2] sm:$0xff]
    %v45 = vld [vmem:[#allocation2 + $0x8] sm:$0xff]
    %v46 = vpack.c.bf16 %v45, %v44
    %v47 = vld [vmem:[#allocation5] sm:$0xf]
    %v48 = vld [vmem:[#allocation5 + $0x4] sm:$0xf]
    %v49 = vld [vmem:[#allocation5 + $0x8] sm:$0xf]
    %v50 = vld [vmem:[#allocation5 + $0xc] sm:$0xf]
    %v51 = vld [vmem:[#allocation5 + $0x10] sm:$0xf]
    %v52 = vld [vmem:[#allocation5 + $0x14] sm:$0xf]
    %v53 = vld [vmem:[#allocation5 + $0x18] sm:$0xf]
    %v54 = vld [vmem:[#allocation5 + $0x1c] sm:$0xf]
    %v55 = vld [vmem:[#allocation5 + $0x20] sm:$0xf]
    %v56 = vld [vmem:[#allocation5 + $0x24] sm:$0xf]
    %v57 = vld [vmem:[#allocation5 + $0x28] sm:$0xf]
    %v58 = vld [vmem:[#allocation5 + $0x2c] sm:$0xf]
    %v59 = vld [vmem:[#allocation5 + $0x30] sm:$0xf]
    %v60 = vld [vmem:[#allocation5 + $0x34] sm:$0xf]
    %v61 = vld [vmem:[#allocation5 + $0x38] sm:$0xf]
    %v62 = vld [vmem:[#allocation5 + $0x3c] sm:$0xf]
    %v63 = vld [vmem:[%s2] sm:$0x1]
    %v65 = vlaneseq
    %v66 = vshrl.u32 %v65, 7
    %v67 = vsub.s32 0, %v66
    %v68 = vrot.slane %v63, %v67
    %v86 = vunpack.c.l.b16 %v47
    %v87 = vunpack.c.l.b16 %v48
    %v88 = vunpack.c.l.b16 %v49
    %v89 = vunpack.c.l.b16 %v50
    %v90 = vunpack.c.l.b16 %v51
    %v91 = vunpack.c.l.b16 %v52
    %v92 = vunpack.c.l.b16 %v53
    %v93 = vunpack.c.l.b16 %v54
    %v94 = vunpack.c.l.b16 %v55
    %v95 = vunpack.c.l.b16 %v56
    %v96 = vunpack.c.l.b16 %v57
    %v97 = vunpack.c.l.b16 %v58
    %v98 = vunpack.c.l.b16 %v59
    %v99 = vunpack.c.l.b16 %v60
    %v100 = vunpack.c.l.b16 %v61
    %v101 = vunpack.c.l.b16 %v62
    %v102 = vpack.c.b16 %v87, %v86
    %v103 = vpack.c.b16 %v89, %v88
    %v104 = vpack.c.b16 %v91, %v90
    %v105 = vpack.c.b16 %v93, %v92
    %v106 = vpack.c.b16 %v95, %v94
    %v107 = vpack.c.b16 %v97, %v96
    %v108 = vpack.c.b16 %v99, %v98
    %v109 = vpack.c.b16 %v101, %v100
    %118 = vmatprep.subr.bf16.mxu0 0
    %119 = vmatpush1.bf16.msra.mxu0 %v102
    %120 = vmatprep.subr.bf16.mxu0 0
    %121 = vmatpush1.bf16.msra.mxu0 %v103
    %122 = vmatprep.subr.bf16.mxu0 0
    %123 = vmatpush1.bf16.msra.mxu0 %v104
    %124 = vmatprep.subr.bf16.mxu0 0
    %125 = vmatpush1.bf16.msra.mxu0 %v105
    %126 = vmatprep.subr.bf16.mxu0 0
    %127 = vmatpush1.bf16.msra.mxu0 %v106
    %128 = vmatprep.subr.bf16.mxu0 0
    %129 = vmatpush1.bf16.msra.mxu0 %v107
    %130 = vmatprep.subr.bf16.mxu0 0
    %131 = vmatpush1.bf16.msra.mxu0 %v108
    %132 = vmatprep.subr.bf16.mxu0 0
    %133 = vmatpush1.bf16.msra.mxu0 %v109
    %134 = vmatprep.subr.bf16.mxu0 0
    %135 = vmatpush1.bf16.msra.mxu0 0
    %136 = vmatprep.subr.bf16.mxu0 0
    %137 = vmatpush1.bf16.msra.mxu0 0
    %138 = vmatprep.subr.bf16.mxu0 0
    %139 = vmatpush1.bf16.msra.mxu0 0
    %140 = vmatprep.subr.bf16.mxu0 0
    %141 = vmatpush1.bf16.msra.mxu0 0
    %142 = vmatprep.subr.bf16.mxu0 0
    %143 = vmatpush1.bf16.msra.mxu0 0
    %144 = vmatprep.subr.bf16.mxu0 0
    %145 = vmatpush1.bf16.msra.mxu0 0
    %146 = vmatprep.subr.bf16.mxu0 0
    %147 = vmatpush1.bf16.msra.mxu0 0
    %148 = vmatprep.subr.bf16.mxu0 0
    %149 = vmatpush1.bf16.msra.mxu0 0
    %150 = vmatprep.mubr.bf16.mxu0 0
    %151 = vmatmul.mubr.bf16.gmra.mrb[0].mxu0 %v46
    %v152 = vpop.f32.mrb[0].mxu0
    %v153 = vadd.f32 %v68, %v152
    %v154 = vpop.f32.mrb[0].mxu0
    %v155 = vpop.f32.mrb[0].mxu0
    %v156 = vadd.f32 %v68, %v155
    %v157 = vpop.f32.mrb[0].mxu0
    %158 = vdwg.mxu0
    %159 = vst [vmem:[#allocation7] sm:$0xff] %v153
    %160 = vst [vmem:[#allocation7 + $0x8] sm:$0xff] %v156
    // Predicated region
    $region22: #{tpu_custom_call.1} parent=1 // pred_check
      _
    $region23: #{tpu_custom_call.1} parent=1 // pred_check_branch
      %162 = sbr.rel (0) target = $region25
    $region24: #{tpu_custom_call.1} parent=1 // pred_region
      %s164 = ssub.s32 256, 256
      %165 = vsyncadd [#allocation4], %s164
      %s166 = sshll.u32 [#allocation7], 4
      %s167 = int_to_ptr.vmem [resolvable:$true] %s166
      %172 = dma.vmem_to_hbm [thread:$0]  %s167, 256, %s3, [#allocation4], 128, 128, 8
    $region25: #{tpu_custom_call.1} parent=1 // pred_fallthru
      _
    // Predicated region
    $region26: #{tpu_custom_call.1} parent=1 // pred_check
      _
    $region27: #{tpu_custom_call.1} parent=1 // pred_check_branch
      %174 = sbr.rel (0) target = $region29
    $region28: #{tpu_custom_call.1} parent=1 // pred_region
      %175 = dma.done [#allocation4], 256
    $region29: #{tpu_custom_call.1} parent=1 // pred_fallthru
      _
    %176 = vsyncpa [#allocation3], 1
    %177 = vsyncpa [#allocation6], 1
    %178 = vsyncpa [#allocation4], 1

</llo_original>
